<compile_context>
chip_gen: v7x
topology: tpu7x:2x2x1
jax: 0.10.0
libtpu: 0.0.40
codegen_flags: <defaults>
</compile_context>

<pallas_src>
import functools

import jax
import jax.numpy as jnp
from jax.experimental import pallas as pl
from jax.experimental.pallas import tpu as pltpu


def _round_up(n, m):
    return ((n + m - 1) // m) * m


def mlp_kernel(x_ref, y_ref, w1a_ref, w1b_ref, b1_ref,
               w2_ref, b2_ref, w3_ref, b3_ref, w4_ref, b4_ref, o_ref):
    """One batch tile of relu(relu(relu(cat@W1+b1)@W2+b2)@W3+b3)@W4+b4."""
    # In-kernel bf16 cast (inputs arrive as f32; no wrapper-side copy).
    xb = x_ref[...].astype(jnp.bfloat16)
    yb = y_ref[...].astype(jnp.bfloat16)

    # Layer 1 with the concat fused in: x@W1a + y@W1b == hstack(x, y) @ W1.
    h1 = (jnp.dot(xb, w1a_ref[...], preferred_element_type=jnp.float32)
          + jnp.dot(yb, w1b_ref[...], preferred_element_type=jnp.float32)
          + b1_ref[...])
    h1 = jnp.maximum(h1, 0.0)

    # Layers 2-3: bf16 MXU operands, f32 accumulation, f32 elementwise
    # (f32 elementwise keeps a single code path valid on v5e).
    h2 = jnp.dot(h1.astype(jnp.bfloat16), w2_ref[...],
                 preferred_element_type=jnp.float32) + b2_ref[...]
    h2 = jnp.maximum(h2, 0.0)

    h3 = jnp.dot(h2.astype(jnp.bfloat16), w3_ref[...],
                 preferred_element_type=jnp.float32) + b3_ref[...]
    h3 = jnp.maximum(h3, 0.0)

    # Layer 4 (out_features == 1), emitted lane-dense:
    #   row[0, b] = sum_d w4[0, d] * h3[b, d]
    # expressed as a dot_general contracting both operands on their feature
    # axis (q @ k^T pattern), so the result lands as a dense (1, TB) row with
    # the batch along lanes -> unmasked stores + dense output DMA.
    row = jax.lax.dot_general(
        w4_ref[...], h3, (((1,), (1,)), ((), ())),
        preferred_element_type=jnp.float32) + b4_ref[0]          # (1, TB)
    o_ref[0] = row.astype(o_ref.dtype)


def prepare_params(params, input1_size):
    """One-time weight prep (hoisted out of the per-call path).

    Splits W1 into the x/y halves, casts matmul weights to bf16, reshapes W4
    into a (1, 128) row and b4 into an SMEM-friendly scalar.
    """
    (w1, b1, w2, b2, w3, b3, w4, b4) = params
    H = w1.shape[1]
    return (
        w1[:input1_size].astype(jnp.bfloat16),   # W1a (x-feature rows)
        w1[input1_size:].astype(jnp.bfloat16),   # W1b (y-feature rows)
        b1.reshape(1, H).astype(jnp.float32),
        w2.astype(jnp.bfloat16),
        b2.reshape(1, H).astype(jnp.float32),
        w3.astype(jnp.bfloat16),
        b3.reshape(1, H).astype(jnp.float32),
        w4.reshape(1, H).astype(jnp.float32),    # W4 as a row
        b4.reshape(1).astype(jnp.float32),       # scalar bias -> SMEM
    )


@functools.partial(jax.jit, static_argnames=("max_tb",))
def net_forward(x, y, prepared, max_tb=2048):
    """JAX wrapper mirroring Net.forward(x, y). `prepared` = prepare_params(...)."""
    (w1a, w1b, b1, w2, b2, w3, b3, w4, b4) = prepared
    B, d1 = x.shape
    d2 = y.shape[1]
    H = w1a.shape[1]          # 128

    # Balanced batch tiling: TB multiple of 8, <= max_tb, padding <= 7 rows.
    n_tiles = max(pl.cdiv(B, max_tb), 1)
    if B >= 16:
        n_tiles = max(n_tiles, 2)   # keep both v7x TensorCores busy
    TB = _round_up(pl.cdiv(B, n_tiles), 8)
    n_tiles = pl.cdiv(B, TB)
    Bp = n_tiles * TB

    if Bp != B:  # <= 7 rows of zero padding; computed then sliced off.
        x = jnp.pad(x, ((0, Bp - B), (0, 0)))
        y = jnp.pad(y, ((0, Bp - B), (0, 0)))

    def pinned(shape):
        # Same block index every grid step -> stays resident in VMEM, no re-DMA.
        return pl.BlockSpec(shape, lambda i: (0,) * len(shape))

    out = pl.pallas_call(
        mlp_kernel,
        out_shape=jax.ShapeDtypeStruct((n_tiles, 1, TB), jnp.float32),
        grid=(n_tiles,),
        in_specs=[
            pl.BlockSpec((TB, d1), lambda i: (i, 0)),   # x tile (f32)
            pl.BlockSpec((TB, d2), lambda i: (i, 0)),   # y tile (f32)
            pinned((d1, H)),                            # W1a
            pinned((d2, H)),                            # W1b
            pinned((1, H)),                             # b1
            pinned((H, H)),                             # W2
            pinned((1, H)),                             # b2
            pinned((H, H)),                             # W3
            pinned((1, H)),                             # b3
            pinned((1, H)),                             # W4 (row)
            pl.BlockSpec(memory_space=pltpu.MemorySpace.SMEM),  # b4 scalar
        ],
        out_specs=pl.BlockSpec((1, 1, TB), lambda i: (i, 0, 0)),  # lane-dense row
        compiler_params=pltpu.CompilerParams(
            dimension_semantics=("parallel",),
            vmem_limit_bytes=32 * 1024 * 1024,
        ),
    )(x, y, w1a, w1b, b1, w2, b2, w3, b3, w4, b4)

    # (n_tiles, 1, TB) row-major flatten == batch order; drop padded rows.
    return out.reshape(Bp)[:B].reshape(B, 1)


def init_params(key, input1_size, input2_size):
    """Deterministic init matching Net.__init__ layer shapes.

    PyTorch nn.Linear default init: U(-1/sqrt(fan_in), 1/sqrt(fan_in)).
    Weights stored [in, out]; biases [1, out].
    """
    d_in = input1_size + input2_size
    dims = [(d_in, 128), (128, 128), (128, 128), (128, 1)]
    params = []
    for fan_in, fan_out in dims:
        kw, kb, key = jax.random.split(key, 3)
        bound = 1.0 / jnp.sqrt(fan_in)
        w = jax.random.uniform(kw, (fan_in, fan_out), jnp.float32, -bound, bound)
        b = jax.random.uniform(kb, (1, fan_out), jnp.float32, -bound, bound)
        params += [w, b]
    return tuple(params)


def reference_forward_f32(x, y, params):
    """Pure-JAX f32 reference of the PyTorch forward."""
    (w1, b1, w2, b2, w3, b3, w4, b4) = params
    h = jnp.concatenate([x, y], axis=1)
    h = jax.nn.relu(h @ w1 + b1)
    h = jax.nn.relu(h @ w2 + b2)
    h = jax.nn.relu(h @ w3 + b3)
    return h @ w4 + b4


def reference_forward_bf16(x, y, params):
    """Reference mirroring the kernel's bf16-operand / f32-accumulate math."""
    (w1, b1, w2, b2, w3, b3, w4, b4) = params
    bf = jnp.bfloat16
    cat = jnp.concatenate([x, y], axis=1)
    h = jnp.maximum(jnp.dot(cat.astype(bf), w1.astype(bf),
                            preferred_element_type=jnp.float32) + b1, 0.0)
    h = jnp.maximum(jnp.dot(h.astype(bf), w2.astype(bf),
                            preferred_element_type=jnp.float32) + b2, 0.0)
    h = jnp.maximum(jnp.dot(h.astype(bf), w3.astype(bf),
                            preferred_element_type=jnp.float32) + b3, 0.0)
    return jnp.sum(h * w4.reshape(1, -1), axis=-1, keepdims=True) + b4.reshape(1, 1)


if __name__ == "__main__":
    key = jax.random.PRNGKey(0)
    k_x, k_y, k_p, k_x2, k_y2 = jax.random.split(key, 5)

    input1_size = 16
    input2_size = 16
    params = init_params(k_p, input1_size, input2_size)
    prepared = prepare_params(params, input1_size)   # one-time weight prep

    # Small batch (single tile).
    B = 8
    x = jax.random.normal(k_x, (B, input1_size), jnp.float32)
    y = jax.random.normal(k_y, (B, input2_size), jnp.float32)
    out = jax.block_until_ready(net_forward(x, y, prepared))
    assert out.shape == (B, 1), out.shape
    ref_bf16 = reference_forward_bf16(x, y, params)
    ref_f32 = reference_forward_f32(x, y, params)
    assert jnp.allclose(out, ref_bf16, atol=1e-2, rtol=1e-2), \
        f"bf16-ref max abs err {jnp.max(jnp.abs(out - ref_bf16))}"
    assert jnp.allclose(out, ref_f32, atol=1e-1, rtol=1e-1), \
        f"f32-ref max abs err {jnp.max(jnp.abs(out - ref_f32))}"

    # Larger, non-multiple batch exercising balanced tiling + small padding.
    B2 = 300
    x2 = jax.random.normal(k_x2, (B2, input1_size), jnp.float32)
    y2 = jax.random.normal(k_y2, (B2, input2_size), jnp.float32)
    out2 = jax.block_until_ready(net_forward(x2, y2, prepared))
    assert out2.shape == (B2, 1), out2.shape
    ref2 = reference_forward_bf16(x2, y2, params)
    assert jnp.allclose(out2, ref2, atol=1e-2, rtol=1e-2), \
        f"bf16-ref max abs err {jnp.max(jnp.abs(out2 - ref2))}"

    print("KERNEL_OK")
</pallas_src>

<mosaic_0001>
module attributes {stable_mosaic.version = 11 : i64} {
  func.func @mlp_kernel(%arg0: i32, %arg1: memref<8x16xf32, #tpu.memory_space<vmem>>, %arg2: memref<8x16xf32, #tpu.memory_space<vmem>>, %arg3: memref<16x128xbf16, #tpu.memory_space<vmem>>, %arg4: memref<16x128xbf16, #tpu.memory_space<vmem>>, %arg5: memref<1x128xf32, #tpu.memory_space<vmem>>, %arg6: memref<128x128xbf16, #tpu.memory_space<vmem>>, %arg7: memref<1x128xf32, #tpu.memory_space<vmem>>, %arg8: memref<128x128xbf16, #tpu.memory_space<vmem>>, %arg9: memref<1x128xf32, #tpu.memory_space<vmem>>, %arg10: memref<1x128xf32, #tpu.memory_space<vmem>>, %arg11: memref<1xf32, #tpu.memory_space<smem>>, %arg12: memref<1x1x8xf32, #tpu.memory_space<vmem>>) attributes {dimension_semantics = [#tpu.dimension_semantics<parallel>], iteration_bounds = array<i64: 1>, scalar_prefetch = 0 : i64, scratch_operands = 0 : i64, tpu.core_type = #tpu.core_type<tc>, window_params = [{transform_indices = @transform_0, window_bounds = array<i64: 8, 16>}, {transform_indices = @transform_1, window_bounds = array<i64: 8, 16>}, {pipeline_mode = #tpu.pipeline_mode<synchronous>, transform_indices = @transform_2, window_bounds = array<i64: 16, 128>}, {pipeline_mode = #tpu.pipeline_mode<synchronous>, transform_indices = @transform_3, window_bounds = array<i64: 16, 128>}, {pipeline_mode = #tpu.pipeline_mode<synchronous>, transform_indices = @transform_4, window_bounds = array<i64: 1, 128>}, {pipeline_mode = #tpu.pipeline_mode<synchronous>, transform_indices = @transform_5, window_bounds = array<i64: 128, 128>}, {pipeline_mode = #tpu.pipeline_mode<synchronous>, transform_indices = @transform_6, window_bounds = array<i64: 1, 128>}, {pipeline_mode = #tpu.pipeline_mode<synchronous>, transform_indices = @transform_7, window_bounds = array<i64: 128, 128>}, {pipeline_mode = #tpu.pipeline_mode<synchronous>, transform_indices = @transform_8, window_bounds = array<i64: 1, 128>}, {pipeline_mode = #tpu.pipeline_mode<synchronous>, transform_indices = @transform_9, window_bounds = array<i64: 1, 128>}, {transform_indices = @transform_10, window_bounds = array<i64: 1>}, {transform_indices = @transform_11, window_bounds = array<i64: 1, 1, 8>}]} {
    %c0 = arith.constant 0 : index
    %c0_0 = arith.constant 0 : index
    %0 = vector.load %arg1[%c0, %c0_0] : memref<8x16xf32, #tpu.memory_space<vmem>>, vector<8x16xf32>
    %1 = arith.truncf %0 : vector<8x16xf32> to vector<8x16xbf16>
    %c0_1 = arith.constant 0 : index
    %c0_2 = arith.constant 0 : index
    %2 = vector.load %arg2[%c0_1, %c0_2] : memref<8x16xf32, #tpu.memory_space<vmem>>, vector<8x16xf32>
    %3 = arith.truncf %2 : vector<8x16xf32> to vector<8x16xbf16>
    %c0_3 = arith.constant 0 : index
    %c0_4 = arith.constant 0 : index
    %4 = vector.load %arg3[%c0_3, %c0_4] : memref<16x128xbf16, #tpu.memory_space<vmem>>, vector<16x128xbf16>
    %cst = arith.constant dense<0.000000e+00> : vector<8x128xf32>
    %5 = tpu.matmul %1, %4, %cst {dimension_numbers = #tpu.dot_dimension_numbers<[1], [0], [0], [1], [0, 0, 1, 1], [], []>} : vector<8x16xbf16>, vector<16x128xbf16>, vector<8x128xf32> -> vector<8x128xf32>
    %c0_5 = arith.constant 0 : index
    %c0_6 = arith.constant 0 : index
    %6 = vector.load %arg4[%c0_5, %c0_6] : memref<16x128xbf16, #tpu.memory_space<vmem>>, vector<16x128xbf16>
    %cst_7 = arith.constant dense<0.000000e+00> : vector<8x128xf32>
    %7 = tpu.matmul %3, %6, %cst_7 {dimension_numbers = #tpu.dot_dimension_numbers<[1], [0], [0], [1], [0, 0, 1, 1], [], []>} : vector<8x16xbf16>, vector<16x128xbf16>, vector<8x128xf32> -> vector<8x128xf32>
    %8 = arith.addf %5, %7 : vector<8x128xf32>
    %c0_8 = arith.constant 0 : index
    %c0_9 = arith.constant 0 : index
    %9 = vector.load %arg5[%c0_8, %c0_9] : memref<1x128xf32, #tpu.memory_space<vmem>>, vector<1x128xf32>
    %10 = vector.broadcast %9 : vector<1x128xf32> to vector<8x128xf32>
    %11 = arith.addf %8, %10 : vector<8x128xf32>
    %cst_10 = arith.constant 0.000000e+00 : f32
    %12 = vector.broadcast %cst_10 : f32 to vector<8x128xf32>
    %13 = arith.maximumf %11, %12 : vector<8x128xf32>
    %14 = arith.truncf %13 : vector<8x128xf32> to vector<8x128xbf16>
    %c0_11 = arith.constant 0 : index
    %c0_12 = arith.constant 0 : index
    %15 = vector.load %arg6[%c0_11, %c0_12] : memref<128x128xbf16, #tpu.memory_space<vmem>>, vector<128x128xbf16>
    %cst_13 = arith.constant dense<0.000000e+00> : vector<8x128xf32>
    %16 = tpu.matmul %14, %15, %cst_13 {dimension_numbers = #tpu.dot_dimension_numbers<[1], [0], [0], [1], [0, 0, 1, 1], [], []>} : vector<8x128xbf16>, vector<128x128xbf16>, vector<8x128xf32> -> vector<8x128xf32>
    %c0_14 = arith.constant 0 : index
    %c0_15 = arith.constant 0 : index
    %17 = vector.load %arg7[%c0_14, %c0_15] : memref<1x128xf32, #tpu.memory_space<vmem>>, vector<1x128xf32>
    %18 = vector.broadcast %17 : vector<1x128xf32> to vector<8x128xf32>
    %19 = arith.addf %16, %18 : vector<8x128xf32>
    %cst_16 = arith.constant 0.000000e+00 : f32
    %20 = vector.broadcast %cst_16 : f32 to vector<8x128xf32>
    %21 = arith.maximumf %19, %20 : vector<8x128xf32>
    %22 = arith.truncf %21 : vector<8x128xf32> to vector<8x128xbf16>
    %c0_17 = arith.constant 0 : index
    %c0_18 = arith.constant 0 : index
    %23 = vector.load %arg8[%c0_17, %c0_18] : memref<128x128xbf16, #tpu.memory_space<vmem>>, vector<128x128xbf16>
    %cst_19 = arith.constant dense<0.000000e+00> : vector<8x128xf32>
    %24 = tpu.matmul %22, %23, %cst_19 {dimension_numbers = #tpu.dot_dimension_numbers<[1], [0], [0], [1], [0, 0, 1, 1], [], []>} : vector<8x128xbf16>, vector<128x128xbf16>, vector<8x128xf32> -> vector<8x128xf32>
    %c0_20 = arith.constant 0 : index
    %c0_21 = arith.constant 0 : index
    %25 = vector.load %arg9[%c0_20, %c0_21] : memref<1x128xf32, #tpu.memory_space<vmem>>, vector<1x128xf32>
    %26 = vector.broadcast %25 : vector<1x128xf32> to vector<8x128xf32>
    %27 = arith.addf %24, %26 : vector<8x128xf32>
    %cst_22 = arith.constant 0.000000e+00 : f32
    %28 = vector.broadcast %cst_22 : f32 to vector<8x128xf32>
    %29 = arith.maximumf %27, %28 : vector<8x128xf32>
    %c0_23 = arith.constant 0 : index
    %c0_24 = arith.constant 0 : index
    %30 = vector.load %arg10[%c0_23, %c0_24] : memref<1x128xf32, #tpu.memory_space<vmem>>, vector<1x128xf32>
    %cst_25 = arith.constant dense<0.000000e+00> : vector<1x8xf32>
    %31 = tpu.matmul %30, %29, %cst_25 {dimension_numbers = #tpu.dot_dimension_numbers<[1], [1], [0], [0], [0, 0, 1, 0], [], []>} : vector<1x128xf32>, vector<8x128xf32>, vector<1x8xf32> -> vector<1x8xf32>
    %c0_26 = arith.constant 0 : index
    %32 = memref.load %arg11[%c0_26] : memref<1xf32, #tpu.memory_space<smem>>
    %33 = vector.broadcast %32 : f32 to vector<1x8xf32>
    %34 = arith.addf %31, %33 : vector<1x8xf32>
    %c0_27 = arith.constant 0 : index
    %c0_28 = arith.constant 0 : index
    %c0_29 = arith.constant 0 : index
    %35 = vector.load %arg12[%c0_27, %c0_28, %c0_29] : memref<1x1x8xf32, #tpu.memory_space<vmem>>, vector<1x1x8xf32>
    %36 = vector.shape_cast %35 : vector<1x1x8xf32> to vector<1x8xf32>
    %37 = vector.shape_cast %34 : vector<1x8xf32> to vector<1x1x8xf32>
    tpu.vector_store %arg12[%c0_27, %c0_28, %c0_29], %37 {strides = array<i32>} : memref<1x1x8xf32, #tpu.memory_space<vmem>>, vector<1x1x8xf32>,
    return
  }
  func.func @transform_0(%arg0: i32) -> (i32, i32) {
    %c0_i32 = arith.constant 0 : i32
    %c0_i32_0 = arith.constant 0 : i32
    return %arg0, %c0_i32 : i32, i32
  }
  func.func @transform_1(%arg0: i32) -> (i32, i32) {
    %c0_i32 = arith.constant 0 : i32
    %c0_i32_0 = arith.constant 0 : i32
    return %arg0, %c0_i32 : i32, i32
  }
  func.func @transform_2(%arg0: i32) -> (i32, i32) {
    %c0_i32 = arith.constant 0 : i32
    %c0_i32_0 = arith.constant 0 : i32
    %c0_i32_1 = arith.constant 0 : i32
    return %c0_i32, %c0_i32_0 : i32, i32
  }
  func.func @transform_3(%arg0: i32) -> (i32, i32) {
    %c0_i32 = arith.constant 0 : i32
    %c0_i32_0 = arith.constant 0 : i32
    %c0_i32_1 = arith.constant 0 : i32
    return %c0_i32, %c0_i32_0 : i32, i32
  }
  func.func @transform_4(%arg0: i32) -> (i32, i32) {
    %c0_i32 = arith.constant 0 : i32
    %c0_i32_0 = arith.constant 0 : i32
    %c0_i32_1 = arith.constant 0 : i32
    return %c0_i32, %c0_i32_0 : i32, i32
  }
  func.func @transform_5(%arg0: i32) -> (i32, i32) {
    %c0_i32 = arith.constant 0 : i32
    %c0_i32_0 = arith.constant 0 : i32
    %c0_i32_1 = arith.constant 0 : i32
    return %c0_i32, %c0_i32_0 : i32, i32
  }
  func.func @transform_6(%arg0: i32) -> (i32, i32) {
    %c0_i32 = arith.constant 0 : i32
    %c0_i32_0 = arith.constant 0 : i32
    %c0_i32_1 = arith.constant 0 : i32
    return %c0_i32, %c0_i32_0 : i32, i32
  }
  func.func @transform_7(%arg0: i32) -> (i32, i32) {
    %c0_i32 = arith.constant 0 : i32
    %c0_i32_0 = arith.constant 0 : i32
    %c0_i32_1 = arith.constant 0 : i32
    return %c0_i32, %c0_i32_0 : i32, i32
  }
  func.func @transform_8(%arg0: i32) -> (i32, i32) {
    %c0_i32 = arith.constant 0 : i32
    %c0_i32_0 = arith.constant 0 : i32
    %c0_i32_1 = arith.constant 0 : i32
    return %c0_i32, %c0_i32_0 : i32, i32
  }
  func.func @transform_9(%arg0: i32) -> (i32, i32) {
    %c0_i32 = arith.constant 0 : i32
    %c0_i32_0 = arith.constant 0 : i32
    %c0_i32_1 = arith.constant 0 : i32
    return %c0_i32, %c0_i32_0 : i32, i32
  }
  func.func @transform_10(%arg0: i32) -> i32 {
    %c0_i32 = arith.constant 0 : i32
    %c0_i32_0 = arith.constant 0 : i32
    return %c0_i32 : i32
  }
  func.func @transform_11(%arg0: i32) -> (i32, i32, i32) {
    %c0_i32 = arith.constant 0 : i32
    %c0_i32_0 = arith.constant 0 : i32
    %c0_i32_1 = arith.constant 0 : i32
    return %arg0, %c0_i32, %c0_i32_0 : i32, i32, i32
  }
}

</mosaic_0001>

<llo_original>
// kernel: net_forward.1
$region0: #{net_forward.1}
  #allocation0 [shape = 'u32[]', space=smem, size = 0x4, offset = 0x4, fixed_abs, tag = 'smem constant byte address 0x4 - core index']
  #allocation1 [shape = 'u32[144,128]{1,0:T(1,128)}', space=vmem, size = 0x12000, scoped, tag = 'internal scratch']
  #allocation2 [shape = 'f32[1]{0:T(128)S(6)}', space=smem, size = 0x200, scoped, tag = 'scoped memory for net_forward.1']
  %s0 = inlined_call_operand.hbm [shape: f32[8,16], index: 0, kind: input, shape index: {}]
  %s1 = inlined_call_operand.hbm [shape: f32[8,16], index: 1, kind: input, shape index: {}]
  %s2 = inlined_call_operand.vmem [shape: bf16[16,128], index: 2, kind: input, shape index: {}]
  %s3 = inlined_call_operand.hbm [shape: bf16[16,128], index: 3, kind: input, shape index: {}]
  %s4 = inlined_call_operand.vmem [shape: f32[1,128], index: 4, kind: input, shape index: {}]
  %s5 = inlined_call_operand.hbm [shape: bf16[128,128], index: 5, kind: input, shape index: {}]
  %s6 = inlined_call_operand.vmem [shape: f32[1,128], index: 6, kind: input, shape index: {}]
  %s7 = inlined_call_operand.hbm [shape: bf16[128,128], index: 7, kind: input, shape index: {}]
  %s8 = inlined_call_operand.vmem [shape: f32[1,128], index: 8, kind: input, shape index: {}]
  %s9 = inlined_call_operand.vmem [shape: f32[1,128], index: 9, kind: input, shape index: {}]
  %s10 = inlined_call_operand.<no memory space> [shape: f32[1], index: 10, kind: input, shape index: {}]
  %s11 = inlined_call_operand.hbm [shape: f32[1,1,8], index: 11, kind: output, shape index: {}]
  %s12 = sld [smem:[#allocation0]]
  $region74: #{net_forward.1} parent=0
    _
  %s14 = ssub.s32 1, %s12
  %s15 = scalar_select 0, %s14, %s12
  %16 = sst [smem:[#allocation2]] %s10
  $region1: #{net_forward.1} parent=0
    #allocation3 [shape = 'u8[4096]{0}', space=vmem, size = 0x1000, scoped, tag = 'input window, operand 0, single buffered']
    #allocation4 [shape = 's32[1]{0}', space=sflag, size = 0x4, scoped, tag = 'scoped memory for net_forward.1']
    #allocation5 [shape = 's32[1]{0}', space=sflag, size = 0x4, scoped, tag = 'scoped memory for net_forward.1']
    #allocation6 [shape = 'u8[4096]{0}', space=vmem, size = 0x1000, scoped, tag = 'input window, operand 1, single buffered']
    #allocation7 [shape = 's32[1]{0}', space=sflag, size = 0x4, scoped, tag = 'scoped memory for net_forward.1']
    #allocation8 [shape = 'u8[4096]{0}', space=vmem, size = 0x1000, scoped, tag = 'input window, operand 3, single buffered']
    #allocation9 [shape = 'u8[32768]{0}', space=vmem, size = 0x8000, scoped, tag = 'input window, operand 5, single buffered']
    #allocation10 [shape = 's32[1]{0}', space=sflag, size = 0x4, scoped, tag = 'scoped memory for net_forward.1']
    #allocation11 [shape = 'u8[32768]{0}', space=vmem, size = 0x8000, scoped, tag = 'input window, operand 7, single buffered']
    #allocation12 [shape = 'u8[512]{0}', space=vmem, size = 0x400, scoped, tag = 'output window, operand 0, single buffered']
    %17 = vsyncpa [#allocation4], 0
    %18 = vsyncpa [#allocation7], 0
    %19 = vsyncpa [#allocation10], 0
    %20 = vsyncpa [#allocation5], 0
    // Predicated region
    $region2: #{net_forward.1} parent=1 // pred_check
      _
    $region3: #{net_forward.1} parent=1 // pred_check_branch
      %22 = sbr.rel (0) target = $region5
    $region4: #{net_forward.1} parent=1 // pred_region
      %s24 = ssub.s32 128, 128
      %25 = vsyncadd [#allocation4], %s24
      %s27 = sshll.u32 [#allocation3], 4
      %s28 = int_to_ptr.vmem [resolvable:$true] %s27
      %30 = dma.hbm_to_vmem [thread:$0]  %s0, 128, %s28, [#allocation4]
    $region5: #{net_forward.1} parent=1 // pred_fallthru
      _
    // Predicated region
    $region6: #{net_forward.1} parent=1 // pred_check
      _
    $region7: #{net_forward.1} parent=1 // pred_check_branch
      %32 = sbr.rel (0) target = $region9
    $region8: #{net_forward.1} parent=1 // pred_region
      %s34 = ssub.s32 128, 128
      %35 = vsyncadd [#allocation7], %s34
      %s37 = sshll.u32 [#allocation6], 4
      %s38 = int_to_ptr.vmem [resolvable:$true] %s37
      %40 = dma.hbm_to_vmem [thread:$0]  %s1, 128, %s38, [#allocation7]
    $region9: #{net_forward.1} parent=1 // pred_fallthru
      _
    // Predicated region
    $region10: #{net_forward.1} parent=1 // pred_check
      _
    $region11: #{net_forward.1} parent=1 // pred_check_branch
      %42 = sbr.rel (0) target = $region13
    $region12: #{net_forward.1} parent=1 // pred_region
      _
    $region13: #{net_forward.1} parent=1 // pred_fallthru
      _
    // Predicated region
    $region14: #{net_forward.1} parent=1 // pred_check
      _
    $region15: #{net_forward.1} parent=1 // pred_check_branch
      %44 = sbr.rel (0) target = $region17
    $region16: #{net_forward.1} parent=1 // pred_region
      %s46 = ssub.s32 128, 128
      %47 = vsyncadd [#allocation7], %s46
      %s48 = sshll.u32 [#allocation8], 4
      %s49 = int_to_ptr.vmem [resolvable:$true] %s48
      %54 = dma.hbm_to_vmem [thread:$0]  %s3, 128, %s49, [#allocation7], 64, 64, 4
    $region17: #{net_forward.1} parent=1 // pred_fallthru
      _
    // Predicated region
    $region18: #{net_forward.1} parent=1 // pred_check
      _
    $region19: #{net_forward.1} parent=1 // pred_check_branch
      %56 = sbr.rel (0) target = $region21
    $region20: #{net_forward.1} parent=1 // pred_region
      _
    $region21: #{net_forward.1} parent=1 // pred_fallthru
      _
    // Predicated region
    $region22: #{net_forward.1} parent=1 // pred_check
      _
    $region23: #{net_forward.1} parent=1 // pred_check_branch
      %58 = sbr.rel (0) target = $region25
    $region24: #{net_forward.1} parent=1 // pred_region
      %s60 = ssub.s32 1024, 1024
      %61 = vsyncadd [#allocation10], %s60
      %s62 = sshll.u32 [#allocation9], 4
      %s63 = int_to_ptr.vmem [resolvable:$true] %s62
      %68 = dma.hbm_to_vmem [thread:$0]  %s5, 1024, %s63, [#allocation10], 64, 64, 4
    $region25: #{net_forward.1} parent=1 // pred_fallthru
      _
    // Predicated region
    $region26: #{net_forward.1} parent=1 // pred_check
      _
    $region27: #{net_forward.1} parent=1 // pred_check_branch
      %70 = sbr.rel (0) target = $region29
    $region28: #{net_forward.1} parent=1 // pred_region
      _
    $region29: #{net_forward.1} parent=1 // pred_fallthru
      _
    // Predicated region
    $region30: #{net_forward.1} parent=1 // pred_check
      _
    $region31: #{net_forward.1} parent=1 // pred_check_branch
      %72 = sbr.rel (0) target = $region33
    $region32: #{net_forward.1} parent=1 // pred_region
      %s74 = ssub.s32 1024, 1024
      %75 = vsyncadd [#allocation10], %s74
      %s76 = sshll.u32 [#allocation11], 4
      %s77 = int_to_ptr.vmem [resolvable:$true] %s76
      %82 = dma.hbm_to_vmem [thread:$0]  %s7, 1024, %s77, [#allocation10], 64, 64, 4
    $region33: #{net_forward.1} parent=1 // pred_fallthru
      _
    // Predicated region
    $region34: #{net_forward.1} parent=1 // pred_check
      _
    $region35: #{net_forward.1} parent=1 // pred_check_branch
      %84 = sbr.rel (0) target = $region37
    $region36: #{net_forward.1} parent=1 // pred_region
      _
    $region37: #{net_forward.1} parent=1 // pred_fallthru
      _
    // Predicated region
    $region38: #{net_forward.1} parent=1 // pred_check
      _
    $region39: #{net_forward.1} parent=1 // pred_check_branch
      %86 = sbr.rel (0) target = $region41
    $region40: #{net_forward.1} parent=1 // pred_region
      _
    $region41: #{net_forward.1} parent=1 // pred_fallthru
      _
    // Predicated region
    $region42: #{net_forward.1} parent=1 // pred_check
      _
    $region43: #{net_forward.1} parent=1 // pred_check_branch
      %88 = sbr.rel (0) target = $region45
    $region44: #{net_forward.1} parent=1 // pred_region
      _
    $region45: #{net_forward.1} parent=1 // pred_fallthru
      _
    // Predicated region
    $region46: #{net_forward.1} parent=1 // pred_check
      _
    $region47: #{net_forward.1} parent=1 // pred_check_branch
      %90 = sbr.rel (0) target = $region49
    $region48: #{net_forward.1} parent=1 // pred_region
      %91 = dma.done [#allocation4], 128
    $region49: #{net_forward.1} parent=1 // pred_fallthru
      _
    // Predicated region
    $region50: #{net_forward.1} parent=1 // pred_check
      _
    $region51: #{net_forward.1} parent=1 // pred_check_branch
      %93 = sbr.rel (0) target = $region53
    $region52: #{net_forward.1} parent=1 // pred_region
      %94 = dma.done [#allocation7], 128
    $region53: #{net_forward.1} parent=1 // pred_fallthru
      _
    // Predicated region
    $region54: #{net_forward.1} parent=1 // pred_check
      _
    $region55: #{net_forward.1} parent=1 // pred_check_branch
      %96 = sbr.rel (0) target = $region57
    $region56: #{net_forward.1} parent=1 // pred_region
      %97 = dma.done [#allocation7], 128
    $region57: #{net_forward.1} parent=1 // pred_fallthru
      _
    // Predicated region
    $region58: #{net_forward.1} parent=1 // pred_check
      _
    $region59: #{net_forward.1} parent=1 // pred_check_branch
      %99 = sbr.rel (0) target = $region61
    $region60: #{net_forward.1} parent=1 // pred_region
      %100 = dma.done [#allocation10], 1024
    $region61: #{net_forward.1} parent=1 // pred_fallthru
      _
    // Predicated region
    $region62: #{net_forward.1} parent=1 // pred_check
      _
    $region63: #{net_forward.1} parent=1 // pred_check_branch
      %102 = sbr.rel (0) target = $region65
    $region64: #{net_forward.1} parent=1 // pred_region
      %103 = dma.done [#allocation10], 1024
    $region65: #{net_forward.1} parent=1 // pred_fallthru
      _
    %v105 = vld [vmem:[#allocation3] sm:$0xff]
    %v106 = vpack.c.bf16 %v105, %v105
    %v107 = vld [vmem:[#allocation6] sm:$0xff]
    %v108 = vpack.c.bf16 %v107, %v107
    %v109 = vld [vmem:[%s2] sm:$0xf]
    %v110 = vld [vmem:[%s2 + $0x4] sm:$0xf]
    %v111 = vld [vmem:[#allocation8] sm:$0xf]
    %v112 = vld [vmem:[#allocation8 + $0x4] sm:$0xf]
    %v115 = vunpack.c.l.b16 %v111
    %v116 = vunpack.c.l.b16 %v112
    %v117 = vpack.c.b16 %v116, %v115
    %vm119 = vcmask 130048
    %v121 = vsel %vm119, %v108, 0
    %123 = vmatprep.subr.bf16.mxu0 0
    %124 = vmatpush1.bf16.msra.mxu0 %v117
    %125 = vmatprep.subr.bf16.mxu0 0
    %126 = vmatpush1.bf16.msra.mxu0 0
    %127 = vmatprep.subr.bf16.mxu0 0
    %128 = vmatpush1.bf16.msra.mxu0 0
    %129 = vmatprep.subr.bf16.mxu0 0
    %130 = vmatpush1.bf16.msra.mxu0 0
    %131 = vmatprep.subr.bf16.mxu0 0
    %132 = vmatpush1.bf16.msra.mxu0 0
    %133 = vmatprep.subr.bf16.mxu0 0
    %134 = vmatpush1.bf16.msra.mxu0 0
    %135 = vmatprep.subr.bf16.mxu0 0
    %136 = vmatpush1.bf16.msra.mxu0 0
    %137 = vmatprep.subr.bf16.mxu0 0
    %138 = vmatpush1.bf16.msra.mxu0 0
    %139 = vmatprep.subr.bf16.mxu0 0
    %140 = vmatpush1.bf16.msra.mxu0 0
    %141 = vmatprep.subr.bf16.mxu0 0
    %142 = vmatpush1.bf16.msra.mxu0 0
    %143 = vmatprep.subr.bf16.mxu0 0
    %144 = vmatpush1.bf16.msra.mxu0 0
    %145 = vmatprep.subr.bf16.mxu0 0
    %146 = vmatpush1.bf16.msra.mxu0 0
    %147 = vmatprep.subr.bf16.mxu0 0
    %148 = vmatpush1.bf16.msra.mxu0 0
    %149 = vmatprep.subr.bf16.mxu0 0
    %150 = vmatpush1.bf16.msra.mxu0 0
    %151 = vmatprep.subr.bf16.mxu0 0
    %152 = vmatpush1.bf16.msra.mxu0 0
    %153 = vmatprep.subr.bf16.mxu0 0
    %154 = vmatpush1.bf16.msra.mxu0 0
    %155 = vmatprep.mubr.bf16.mxu0 0
    %156 = vmatmul.mubr.bf16.gmra.mrb[0].mxu0 %v121
    %v157 = vpop.f32.mrb[0].mxu0
    %v158 = vadd.f32 0.0, %v157
    %v159 = vpop.f32.mrb[0].mxu0
    %v160 = vpop.f32.mrb[0].mxu0
    %v161 = vpop.f32.mrb[0].mxu0
    %162 = vdwg.mxu0
    %v165 = vunpack.c.l.b16 %v109
    %v166 = vunpack.c.l.b16 %v110
    %v167 = vpack.c.b16 %v166, %v165
    %v170 = vsel %vm119, %v106, 0
    %172 = vmatprep.subr.bf16.mxu0 0
    %173 = vmatpush1.bf16.msra.mxu0 %v167
    %174 = vmatprep.subr.bf16.mxu0 0
    %175 = vmatpush1.bf16.msra.mxu0 0
    %176 = vmatprep.subr.bf16.mxu0 0
    %177 = vmatpush1.bf16.msra.mxu0 0
    %178 = vmatprep.subr.bf16.mxu0 0
    %179 = vmatpush1.bf16.msra.mxu0 0
    %180 = vmatprep.subr.bf16.mxu0 0
    %181 = vmatpush1.bf16.msra.mxu0 0
    %182 = vmatprep.subr.bf16.mxu0 0
    %183 = vmatpush1.bf16.msra.mxu0 0
    %184 = vmatprep.subr.bf16.mxu0 0
    %185 = vmatpush1.bf16.msra.mxu0 0
    %186 = vmatprep.subr.bf16.mxu0 0
    %187 = vmatpush1.bf16.msra.mxu0 0
    %188 = vmatprep.subr.bf16.mxu0 0
    %189 = vmatpush1.bf16.msra.mxu0 0
    %190 = vmatprep.subr.bf16.mxu0 0
    %191 = vmatpush1.bf16.msra.mxu0 0
    %192 = vmatprep.subr.bf16.mxu0 0
    %193 = vmatpush1.bf16.msra.mxu0 0
    %194 = vmatprep.subr.bf16.mxu0 0
    %195 = vmatpush1.bf16.msra.mxu0 0
    %196 = vmatprep.subr.bf16.mxu0 0
    %197 = vmatpush1.bf16.msra.mxu0 0
    %198 = vmatprep.subr.bf16.mxu0 0
    %199 = vmatpush1.bf16.msra.mxu0 0
    %200 = vmatprep.subr.bf16.mxu0 0
    %201 = vmatpush1.bf16.msra.mxu0 0
    %202 = vmatprep.subr.bf16.mxu0 0
    %203 = vmatpush1.bf16.msra.mxu0 0
    %204 = vmatprep.mubr.bf16.mxu0 0
    %205 = vmatmul.mubr.bf16.gmra.mrb[0].mxu0 %v170
    %v206 = vpop.f32.mrb[0].mxu0
    %v207 = vadd.f32 %v158, %v206
    %v208 = vpop.f32.mrb[0].mxu0
    %v209 = vpop.f32.mrb[0].mxu0
    %v210 = vpop.f32.mrb[0].mxu0
    %211 = vdwg.mxu0
    %v212 = vld [vmem:[%s4] sm:$0x1]
    %v214 = vlaneseq
    %v215 = vshrl.u32 %v214, 7
    %v216 = vsub.s32 0, %v215
    %v217 = vrot.slane %v212, %v216
    %v219 = vadd.f32 %v207, %v217
    %v220 = vmax.f32 %v219, 0.0
    %v221 = vpack.c.bf16 %v220, %v220
    %v222 = vld [vmem:[#allocation9] sm:$0xf]
    %v223 = vld [vmem:[#allocation9 + $0x4] sm:$0xf]
    %v224 = vld [vmem:[#allocation9 + $0x8] sm:$0xf]
    %v225 = vld [vmem:[#allocation9 + $0xc] sm:$0xf]
    %v226 = vld [vmem:[#allocation9 + $0x10] sm:$0xf]
    %v227 = vld [vmem:[#allocation9 + $0x14] sm:$0xf]
    %v228 = vld [vmem:[#allocation9 + $0x18] sm:$0xf]
    %v229 = vld [vmem:[#allocation9 + $0x1c] sm:$0xf]
    %v230 = vld [vmem:[#allocation9 + $0x20] sm:$0xf]
    %v231 = vld [vmem:[#allocation9 + $0x24] sm:$0xf]
    %v232 = vld [vmem:[#allocation9 + $0x28] sm:$0xf]
    %v233 = vld [vmem:[#allocation9 + $0x2c] sm:$0xf]
    %v234 = vld [vmem:[#allocation9 + $0x30] sm:$0xf]
    %v235 = vld [vmem:[#allocation9 + $0x34] sm:$0xf]
    %v236 = vld [vmem:[#allocation9 + $0x38] sm:$0xf]
    %v237 = vld [vmem:[#allocation9 + $0x3c] sm:$0xf]
    %v238 = vld [vmem:[%s6] sm:$0x1]
    %v240 = vlaneseq
    %v241 = vshrl.u32 %v240, 7
    %v242 = vsub.s32 0, %v241
    %v243 = vrot.slane %v238, %v242
    %v261 = vunpack.c.l.b16 %v222
    %v262 = vunpack.c.l.b16 %v223
    %v263 = vunpack.c.l.b16 %v224
    %v264 = vunpack.c.l.b16 %v225
    %v265 = vunpack.c.l.b16 %v226
    %v266 = vunpack.c.l.b16 %v227
    %v267 = vunpack.c.l.b16 %v228
    %v268 = vunpack.c.l.b16 %v229
    %v269 = vunpack.c.l.b16 %v230
    %v270 = vunpack.c.l.b16 %v231
    %v271 = vunpack.c.l.b16 %v232
    %v272 = vunpack.c.l.b16 %v233
    %v273 = vunpack.c.l.b16 %v234
    %v274 = vunpack.c.l.b16 %v235
    %v275 = vunpack.c.l.b16 %v236
    %v276 = vunpack.c.l.b16 %v237
    %v277 = vpack.c.b16 %v262, %v261
    %v278 = vpack.c.b16 %v264, %v263
    %v279 = vpack.c.b16 %v266, %v265
    %v280 = vpack.c.b16 %v268, %v267
    %v281 = vpack.c.b16 %v270, %v269
    %v282 = vpack.c.b16 %v272, %v271
    %v283 = vpack.c.b16 %v274, %v273
    %v284 = vpack.c.b16 %v276, %v275
    %293 = vmatprep.subr.bf16.mxu0 0
    %294 = vmatpush1.bf16.msra.mxu0 %v277
    %295 = vmatprep.subr.bf16.mxu0 0
    %296 = vmatpush1.bf16.msra.mxu0 %v278
    %297 = vmatprep.subr.bf16.mxu0 0
    %298 = vmatpush1.bf16.msra.mxu0 %v279
    %299 = vmatprep.subr.bf16.mxu0 0
    %300 = vmatpush1.bf16.msra.mxu0 %v280
    %301 = vmatprep.subr.bf16.mxu0 0
    %302 = vmatpush1.bf16.msra.mxu0 %v281
    %303 = vmatprep.subr.bf16.mxu0 0
    %304 = vmatpush1.bf16.msra.mxu0 %v282
    %305 = vmatprep.subr.bf16.mxu0 0
    %306 = vmatpush1.bf16.msra.mxu0 %v283
    %307 = vmatprep.subr.bf16.mxu0 0
    %308 = vmatpush1.bf16.msra.mxu0 %v284
    %309 = vmatprep.subr.bf16.mxu0 0
    %310 = vmatpush1.bf16.msra.mxu0 0
    %311 = vmatprep.subr.bf16.mxu0 0
    %312 = vmatpush1.bf16.msra.mxu0 0
    %313 = vmatprep.subr.bf16.mxu0 0
    %314 = vmatpush1.bf16.msra.mxu0 0
    %315 = vmatprep.subr.bf16.mxu0 0
    %316 = vmatpush1.bf16.msra.mxu0 0
    %317 = vmatprep.subr.bf16.mxu0 0
    %318 = vmatpush1.bf16.msra.mxu0 0
    %319 = vmatprep.subr.bf16.mxu0 0
    %320 = vmatpush1.bf16.msra.mxu0 0
    %321 = vmatprep.subr.bf16.mxu0 0
    %322 = vmatpush1.bf16.msra.mxu0 0
    %323 = vmatprep.subr.bf16.mxu0 0
    %324 = vmatpush1.bf16.msra.mxu0 0
    %325 = vmatprep.mubr.bf16.mxu0 0
    %326 = vmatmul.mubr.bf16.gmra.mrb[0].mxu0 %v221
    %v327 = vpop.f32.mrb[0].mxu0
    %v328 = vadd.f32 %v243, %v327
    %v329 = vpop.f32.mrb[0].mxu0
    %v330 = vpop.f32.mrb[0].mxu0
    %v331 = vpop.f32.mrb[0].mxu0
    %332 = vdwg.mxu0
    %v333 = vmax.f32 %v328, 0.0
    %v334 = vpack.c.bf16 %v333, %v333
    %v335 = vld [vmem:[#allocation11] sm:$0xf]
    %v336 = vld [vmem:[#allocation11 + $0x4] sm:$0xf]
    %v337 = vld [vmem:[#allocation11 + $0x8] sm:$0xf]
    %v338 = vld [vmem:[#allocation11 + $0xc] sm:$0xf]
    %v339 = vld [vmem:[#allocation11 + $0x10] sm:$0xf]
    %v340 = vld [vmem:[#allocation11 + $0x14] sm:$0xf]
    %v341 = vld [vmem:[#allocation11 + $0x18] sm:$0xf]
    %v342 = vld [vmem:[#allocation11 + $0x1c] sm:$0xf]
    %v343 = vld [vmem:[#allocation11 + $0x20] sm:$0xf]
    %v344 = vld [vmem:[#allocation11 + $0x24] sm:$0xf]
    %v345 = vld [vmem:[#allocation11 + $0x28] sm:$0xf]
    %v346 = vld [vmem:[#allocation11 + $0x2c] sm:$0xf]
    %v347 = vld [vmem:[#allocation11 + $0x30] sm:$0xf]
    %v348 = vld [vmem:[#allocation11 + $0x34] sm:$0xf]
    %v349 = vld [vmem:[#allocation11 + $0x38] sm:$0xf]
    %v350 = vld [vmem:[#allocation11 + $0x3c] sm:$0xf]
    %v351 = vld [vmem:[%s8] sm:$0x1]
    %v353 = vlaneseq
    %v354 = vshrl.u32 %v353, 7
    %v355 = vsub.s32 0, %v354
    %v356 = vrot.slane %v351, %v355
    %v374 = vunpack.c.l.b16 %v335
    %v375 = vunpack.c.l.b16 %v336
    %v376 = vunpack.c.l.b16 %v337
    %v377 = vunpack.c.l.b16 %v338
    %v378 = vunpack.c.l.b16 %v339
    %v379 = vunpack.c.l.b16 %v340
    %v380 = vunpack.c.l.b16 %v341
    %v381 = vunpack.c.l.b16 %v342
    %v382 = vunpack.c.l.b16 %v343
    %v383 = vunpack.c.l.b16 %v344
    %v384 = vunpack.c.l.b16 %v345
    %v385 = vunpack.c.l.b16 %v346
    %v386 = vunpack.c.l.b16 %v347
    %v387 = vunpack.c.l.b16 %v348
    %v388 = vunpack.c.l.b16 %v349
    %v389 = vunpack.c.l.b16 %v350
    %v390 = vpack.c.b16 %v375, %v374
    %v391 = vpack.c.b16 %v377, %v376
    %v392 = vpack.c.b16 %v379, %v378
    %v393 = vpack.c.b16 %v381, %v380
    %v394 = vpack.c.b16 %v383, %v382
    %v395 = vpack.c.b16 %v385, %v384
    %v396 = vpack.c.b16 %v387, %v386
    %v397 = vpack.c.b16 %v389, %v388
    %406 = vmatprep.subr.bf16.mxu0 0
    %407 = vmatpush1.bf16.msra.mxu0 %v390
    %408 = vmatprep.subr.bf16.mxu0 0
    %409 = vmatpush1.bf16.msra.mxu0 %v391
    %410 = vmatprep.subr.bf16.mxu0 0
    %411 = vmatpush1.bf16.msra.mxu0 %v392
    %412 = vmatprep.subr.bf16.mxu0 0
    %413 = vmatpush1.bf16.msra.mxu0 %v393
    %414 = vmatprep.subr.bf16.mxu0 0
    %415 = vmatpush1.bf16.msra.mxu0 %v394
    %416 = vmatprep.subr.bf16.mxu0 0
    %417 = vmatpush1.bf16.msra.mxu0 %v395
    %418 = vmatprep.subr.bf16.mxu0 0
    %419 = vmatpush1.bf16.msra.mxu0 %v396
    %420 = vmatprep.subr.bf16.mxu0 0
    %421 = vmatpush1.bf16.msra.mxu0 %v397
    %422 = vmatprep.subr.bf16.mxu0 0
    %423 = vmatpush1.bf16.msra.mxu0 0
    %424 = vmatprep.subr.bf16.mxu0 0
    %425 = vmatpush1.bf16.msra.mxu0 0
    %426 = vmatprep.subr.bf16.mxu0 0
    %427 = vmatpush1.bf16.msra.mxu0 0
    %428 = vmatprep.subr.bf16.mxu0 0
    %429 = vmatpush1.bf16.msra.mxu0 0
    %430 = vmatprep.subr.bf16.mxu0 0
    %431 = vmatpush1.bf16.msra.mxu0 0
    %432 = vmatprep.subr.bf16.mxu0 0
    %433 = vmatpush1.bf16.msra.mxu0 0
    %434 = vmatprep.subr.bf16.mxu0 0
    %435 = vmatpush1.bf16.msra.mxu0 0
    %436 = vmatprep.subr.bf16.mxu0 0
    %437 = vmatpush1.bf16.msra.mxu0 0
    %438 = vmatprep.mubr.bf16.mxu0 0
    %439 = vmatmul.mubr.bf16.gmra.mrb[0].mxu0 %v334
    %v440 = vpop.f32.mrb[0].mxu0
    %v441 = vadd.f32 %v356, %v440
    %v442 = vpop.f32.mrb[0].mxu0
    %v443 = vpop.f32.mrb[0].mxu0
    %v444 = vpop.f32.mrb[0].mxu0
    %445 = vdwg.mxu0
    %v446 = vmax.f32 %v441, 0.0
    %v447 = vld [vmem:[%s9] sm:$0x1]
    %s448 = sld [smem:[#allocation2]]
    %v449 = vstv %s448
    %450 = vmatprep.subr.mxu0 0.0
    %451 = vmatpush1.xpose.msra.mxu0 %v446
    %452 = vmatprep.subr.mxu0 0.0
    %453 = vmatpush1.xpose.msra.mxu0 0.0
    %454 = vmatprep.subr.mxu0 0.0
    %455 = vmatpush1.xpose.msra.mxu0 0.0
    %456 = vmatprep.subr.mxu0 0.0
    %457 = vmatpush1.xpose.msra.mxu0 0.0
    %458 = vmatprep.subr.mxu0 0.0
    %459 = vmatpush1.xpose.msra.mxu0 0.0
    %460 = vmatprep.subr.mxu0 0.0
    %461 = vmatpush1.xpose.msra.mxu0 0.0
    %462 = vmatprep.subr.mxu0 0.0
    %463 = vmatpush1.xpose.msra.mxu0 0.0
    %464 = vmatprep.subr.mxu0 0.0
    %465 = vmatpush1.xpose.msra.mxu0 0.0
    %466 = vmatprep.subr.mxu0 0.0
    %467 = vmatpush1.xpose.msra.mxu0 0.0
    %468 = vmatprep.subr.mxu0 0.0
    %469 = vmatpush1.xpose.msra.mxu0 0.0
    %470 = vmatprep.subr.mxu0 0.0
    %471 = vmatpush1.xpose.msra.mxu0 0.0
    %472 = vmatprep.subr.mxu0 0.0
    %473 = vmatpush1.xpose.msra.mxu0 0.0
    %474 = vmatprep.subr.mxu0 0.0
    %475 = vmatpush1.xpose.msra.mxu0 0.0
    %476 = vmatprep.subr.mxu0 0.0
    %477 = vmatpush1.xpose.msra.mxu0 0.0
    %478 = vmatprep.subr.mxu0 0.0
    %479 = vmatpush1.xpose.msra.mxu0 0.0
    %480 = vmatprep.subr.mxu0 0.0
    %481 = vmatpush1.xpose.msra.mxu0 0.0
    %482 = vmatprep.subr.mxu0 0.0
    %483 = vmatpush1.xpose.msra.mxu0 0.0
    %484 = vmatprep.subr.mxu0 0.0
    %485 = vmatpush1.xpose.msra.mxu0 0.0
    %486 = vmatprep.subr.mxu0 0.0
    %487 = vmatpush1.xpose.msra.mxu0 0.0
    %488 = vmatprep.subr.mxu0 0.0
    %489 = vmatpush1.xpose.msra.mxu0 0.0
    %490 = vmatprep.subr.mxu0 0.0
    %491 = vmatpush1.xpose.msra.mxu0 0.0
    %492 = vmatprep.subr.mxu0 0.0
    %493 = vmatpush1.xpose.msra.mxu0 0.0
    %494 = vmatprep.subr.mxu0 0.0
    %495 = vmatpush1.xpose.msra.mxu0 0.0
    %496 = vmatprep.subr.mxu0 0.0
    %497 = vmatpush1.xpose.msra.mxu0 0.0
    %498 = vmatprep.subr.mxu0 0.0
    %499 = vmatpush1.xpose.msra.mxu0 0.0
    %500 = vmatprep.subr.mxu0 0.0
    %501 = vmatpush1.xpose.msra.mxu0 0.0
    %502 = vmatprep.subr.mxu0 0.0
    %503 = vmatpush1.xpose.msra.mxu0 0.0
    %504 = vmatprep.subr.mxu0 0.0
    %505 = vmatpush1.xpose.msra.mxu0 0.0
    %506 = vmatprep.subr.mxu0 0.0
    %507 = vmatpush1.xpose.msra.mxu0 0.0
    %508 = vmatprep.subr.mxu0 0.0
    %509 = vmatpush1.xpose.msra.mxu0 0.0
    %510 = vmatprep.subr.mxu0 0.0
    %511 = vmatpush1.xpose.msra.mxu0 0.0
    %512 = vmatprep.subr.mxu0 0.0
    %513 = vmatpush1.xpose.msra.mxu0 0.0
    %514 = vmatprep.mubr.f32.mxu0 0.0
    %515 = vmatmul.mubr.f32.gmra.mrb[0].mxu0 %v447
    %v516 = vpop.f32.mrb[0].mxu0
    %v517 = vadd.f32 %v449, %v516
    %v518 = vpop.f32.mrb[0].mxu0
    %519 = vdwg.mxu0
    %vm520 = vcmask 57344
    %521 = vst.msk [vmem:[#allocation12] sm:$0x1] %vm520, %v517
    // Predicated region
    $region66: #{net_forward.1} parent=1 // pred_check
      _
    $region67: #{net_forward.1} parent=1 // pred_check_branch
      %523 = sbr.rel (0) target = $region69
    $region68: #{net_forward.1} parent=1 // pred_region
      %s525 = ssub.s32 16, 16
      %526 = vsyncadd [#allocation5], %s525
      %s528 = sshll.u32 [#allocation12], 4
      %s529 = int_to_ptr.vmem [resolvable:$true] %s528
      %531 = dma.vmem_to_hbm [thread:$0]  %s529, 16, %s11, [#allocation5]
    $region69: #{net_forward.1} parent=1 // pred_fallthru
      _
    // Predicated region
    $region70: #{net_forward.1} parent=1 // pred_check
      _
    $region71: #{net_forward.1} parent=1 // pred_check_branch
      %533 = sbr.rel (0) target = $region73
    $region72: #{net_forward.1} parent=1 // pred_region
      %534 = dma.done [#allocation5], 16
    $region73: #{net_forward.1} parent=1 // pred_fallthru
      _
    %535 = vsyncpa [#allocation4], 1
    %536 = vsyncpa [#allocation7], 1
    %537 = vsyncpa [#allocation10], 1
    %538 = vsyncpa [#allocation5], 1

</llo_original>
